<compile_context>
chip_gen: v5e
topology: v5e:2x2
jax: 0.10.0
libtpu: 0.0.40
codegen_flags: <defaults>
</compile_context>

<pallas_src>
import math

import jax
import jax.numpy as jnp
from jax.experimental import pallas as pl
from jax.experimental.pallas import tpu as pltpu


def _make_kernel(num_heads: int, block_b: int, seq_len: int, embed_dim: int):
    H, Bb, T, E = num_heads, block_b, seq_len, embed_dim
    assert E % H == 0
    hd = E // H
    scaling = 1.0 / math.sqrt(hd)

    def kernel(x_ref, wqkv_ref, bqkv_ref, wo_ref, bo_ref, g_ref, beta_ref, o_ref):
        x = x_ref[...].astype(jnp.float32)                       # (Bb*T, C)

        # --- fused QKV projection: single MXU matmul with K = C ---
        qkv = jnp.dot(x, wqkv_ref[...],
                      preferred_element_type=jnp.float32) + bqkv_ref[...]
        q = qkv[:, 0:E] * scaling
        k = qkv[:, E:2 * E]
        v = qkv[:, 2 * E:3 * E]

        # heads stay on the channel (lane) axis; batch goes to a leading dim
        q3 = q.reshape(Bb, T, E)
        k3 = k.reshape(Bb, T, E)
        v3 = v.reshape(Bb, T, E)

        # strictly-causal mask: query t may only attend to keys s < t
        row = jax.lax.broadcasted_iota(jnp.int32, (Bb, T, T), 1)
        col = jax.lax.broadcasted_iota(jnp.int32, (Bb, T, T), 2)
        allow = col < row

        # per-head channel masks (static constants; selects head h's hd lanes)
        lane = jax.lax.broadcasted_iota(jnp.int32, (1, 1, E), 2)

        attn = jnp.zeros((Bb, T, E), jnp.float32)
        for h in range(H):
            head = ((lane >= h * hd) & (lane < (h + 1) * hd)).astype(jnp.float32)
            qh = q3 * head                                        # zero other heads
            vh = v3 * head
            # batched logits: zeroed lanes contribute nothing -> per-head logits
            logits = jnp.einsum("bte,bse->bts", qh, k3,
                                preferred_element_type=jnp.float32)   # (Bb,T,T)
            logits = jnp.where(allow, logits, -1e30)
            # scalar bias == one extra attend-able slot with logit 0 and value 0,
            # folded into the softmax normalization (same math as fairseq concat).
            m = jnp.maximum(jnp.max(logits, axis=-1, keepdims=True), 0.0)
            p = jnp.exp(logits - m)
            denom = jnp.sum(p, axis=-1, keepdims=True) + jnp.exp(-m)
            attn = attn + jnp.einsum("bts,bse->bte", p, vh,
                                     preferred_element_type=jnp.float32) / denom

        # --- single full-width output projection (K = E) ---
        out = jnp.dot(attn.reshape(Bb * T, E), wo_ref[...],
                      preferred_element_type=jnp.float32) + bo_ref[...]

        # residual + LayerNorm over channels (eps = 1e-5, biased variance)
        y = out + x
        mean = jnp.mean(y, axis=-1, keepdims=True)
        var = jnp.mean((y - mean) ** 2, axis=-1, keepdims=True)
        yn = (y - mean) * jax.lax.rsqrt(var + 1e-5)
        o_ref[...] = (yn * g_ref[...] + beta_ref[...]).astype(o_ref.dtype)

    return kernel


def self_attention_forward(x_tbc, params, num_heads, block_b=None):
    """x_tbc: (Time, Batch, Channel) as fed by the PyTorch module."""
    T, B, C = x_tbc.shape
    E = params["wq"].shape[0]

    if block_b is None:
        block_b = B if B <= 8 else next(d for d in (8, 4, 2, 1) if B % d == 0)
    assert B % block_b == 0

    # batch-major, flattened to a lane-friendly contiguous (B*T, C) slab
    x_flat = jnp.transpose(x_tbc, (1, 0, 2)).reshape(B * T, C)

    # fused, pre-transposed weights so the kernel does plain  y = x @ W + b
    wqkv = jnp.concatenate([params["wq"].T, params["wk"].T, params["wv"].T], axis=1)  # (C, 3E)
    bqkv = jnp.concatenate([params["bq"], params["bk"], params["bv"]]).reshape(1, 3 * E)
    wo_t = params["wo"].T                                        # (E, C)
    bo = params["bo"].reshape(1, C)
    g = params["ln_g"].reshape(1, C)
    b = params["ln_b"].reshape(1, C)

    def full(shape):
        return pl.BlockSpec(shape, lambda i: tuple(0 for _ in shape))

    grid = (B // block_b,)
    out_flat = pl.pallas_call(
        _make_kernel(num_heads, block_b, T, E),
        out_shape=jax.ShapeDtypeStruct((B * T, C), x_tbc.dtype),
        grid=grid,
        in_specs=[
            pl.BlockSpec((block_b * T, C), lambda i: (i, 0)),    # x block (Bb batch elems)
            full((C, 3 * E)), full((1, 3 * E)),                  # fused Wqkv, bqkv
            full((E, C)), full((1, C)),                          # Wo^T, bo
            full((1, C)), full((1, C)),                          # ln gamma, ln beta
        ],
        out_specs=pl.BlockSpec((block_b * T, C), lambda i: (i, 0)),
        compiler_params=pltpu.CompilerParams(
            dimension_semantics=("parallel",)),                  # batch blocks independent
    )(x_flat, wqkv, bqkv, wo_t, bo, g, b)
    return jnp.transpose(out_flat.reshape(B, T, C), (1, 0, 2))   # back to (T, B, C)


def reference(x_tbc, params, num_heads):
    """Pure-JAX transcription of the PyTorch forward (with explicit scalar_bias concat)."""
    T, B, C = x_tbc.shape
    E = params["wq"].shape[0]
    hd = E // num_heads
    q = jnp.einsum("tbc,ec->tbe", x_tbc, params["wq"]) + params["bq"]
    k = jnp.einsum("tbc,ec->tbe", x_tbc, params["wk"]) + params["bk"]
    v = jnp.einsum("tbc,ec->tbe", x_tbc, params["wv"]) + params["bv"]
    q = q * (hd ** -0.5)
    q = q.reshape(T, B * num_heads, hd).transpose(1, 0, 2)
    k = k.reshape(T, B * num_heads, hd).transpose(1, 0, 2)
    v = v.reshape(T, B * num_heads, hd).transpose(1, 0, 2)
    logits = jnp.einsum("ntd,nsd->nts", q, k)
    logits = logits * jnp.tril(jnp.ones((T, T), jnp.float32), k=-1)
    logits = logits + jnp.triu(jnp.full((T, T), -jnp.inf, jnp.float32), k=0)
    logits = jnp.concatenate(
        [jnp.zeros((B * num_heads, T, 1), jnp.float32), logits], axis=2)
    v = jnp.concatenate(
        [jnp.zeros((B * num_heads, 1, hd), jnp.float32), v], axis=1)
    w = jax.nn.softmax(logits, axis=-1)
    attn = jnp.einsum("nts,nsd->ntd", w, v)
    attn = attn.transpose(1, 0, 2).reshape(T, B, E)
    out = jnp.einsum("tbe,ce->tbc", attn, params["wo"]) + params["bo"]
    y = out + x_tbc
    mean = y.mean(-1, keepdims=True)
    var = ((y - mean) ** 2).mean(-1, keepdims=True)
    yn = (y - mean) / jnp.sqrt(var + 1e-5)
    return yn * params["ln_g"] + params["ln_b"]


if __name__ == "__main__":
    # out_channels = 32, embed_dim = 32, num_heads = 4, seq = 8, batch = 2
    C, E, H, T, B = 32, 32, 4, 8, 2
    key = jax.random.PRNGKey(0)
    ks = jax.random.split(key, 5)

    # Deterministic init mirroring the module's __init__ (dropout = 0):
    #   Linear weights ~ N(0, sqrt(1/in_features)), biases = 0, LN gamma=1, beta=0.
    # NOTE: out_proj in fairseq is weight-normalized; that is a pure
    # reparameterization of the same effective weight, so we initialize the
    # effective weight directly.
    params = {
        "wq": jax.random.normal(ks[0], (E, C), jnp.float32) * math.sqrt(1.0 / C),
        "wk": jax.random.normal(ks[1], (E, C), jnp.float32) * math.sqrt(1.0 / C),
        "wv": jax.random.normal(ks[2], (E, C), jnp.float32) * math.sqrt(1.0 / C),
        "wo": jax.random.normal(ks[3], (C, E), jnp.float32) * math.sqrt(1.0 / E),
        "bq": jnp.zeros((E,), jnp.float32),
        "bk": jnp.zeros((E,), jnp.float32),
        "bv": jnp.zeros((E,), jnp.float32),
        "bo": jnp.zeros((C,), jnp.float32),
        "ln_g": jnp.ones((C,), jnp.float32),
        "ln_b": jnp.zeros((C,), jnp.float32),
    }
    x = jax.random.normal(ks[4], (T, B, C), jnp.float32)   # (Time, Batch, Channel)

    out = jax.block_until_ready(self_attention_forward(x, params, H))
    ref = jax.block_until_ready(reference(x, params, H))

    assert out.shape == (T, B, C)
    assert jnp.all(jnp.isfinite(out))
    assert jnp.allclose(out, ref, rtol=1e-4, atol=1e-5), \
        f"max abs err {jnp.max(jnp.abs(out - ref))}"
    print("KERNEL_OK")
</pallas_src>

<mosaic_0001>
module attributes {stable_mosaic.version = 11 : i64} {
  func.func @kernel(%arg0: i32, %arg1: memref<16x32xf32, #tpu.memory_space<vmem>>, %arg2: memref<32x96xf32, #tpu.memory_space<vmem>>, %arg3: memref<1x96xf32, #tpu.memory_space<vmem>>, %arg4: memref<32x32xf32, #tpu.memory_space<vmem>>, %arg5: memref<1x32xf32, #tpu.memory_space<vmem>>, %arg6: memref<1x32xf32, #tpu.memory_space<vmem>>, %arg7: memref<1x32xf32, #tpu.memory_space<vmem>>, %arg8: memref<16x32xf32, #tpu.memory_space<vmem>>) attributes {dimension_semantics = [#tpu.dimension_semantics<parallel>], iteration_bounds = array<i64: 1>, scalar_prefetch = 0 : i64, scratch_operands = 0 : i64, tpu.core_type = #tpu.core_type<tc>, window_params = [{transform_indices = @transform_0, window_bounds = array<i64: 16, 32>}, {pipeline_mode = #tpu.pipeline_mode<synchronous>, transform_indices = @transform_1, window_bounds = array<i64: 32, 96>}, {pipeline_mode = #tpu.pipeline_mode<synchronous>, transform_indices = @transform_2, window_bounds = array<i64: 1, 96>}, {pipeline_mode = #tpu.pipeline_mode<synchronous>, transform_indices = @transform_3, window_bounds = array<i64: 32, 32>}, {pipeline_mode = #tpu.pipeline_mode<synchronous>, transform_indices = @transform_4, window_bounds = array<i64: 1, 32>}, {pipeline_mode = #tpu.pipeline_mode<synchronous>, transform_indices = @transform_5, window_bounds = array<i64: 1, 32>}, {pipeline_mode = #tpu.pipeline_mode<synchronous>, transform_indices = @transform_6, window_bounds = array<i64: 1, 32>}, {transform_indices = @transform_7, window_bounds = array<i64: 16, 32>}]} {
    %c0 = arith.constant 0 : index
    %c0_0 = arith.constant 0 : index
    %0 = vector.load %arg1[%c0, %c0_0] : memref<16x32xf32, #tpu.memory_space<vmem>>, vector<16x32xf32>
    %c0_1 = arith.constant 0 : index
    %c0_2 = arith.constant 0 : index
    %1 = vector.load %arg2[%c0_1, %c0_2] : memref<32x96xf32, #tpu.memory_space<vmem>>, vector<32x96xf32>
    %cst = arith.constant dense<0.000000e+00> : vector<16x96xf32>
    %2 = tpu.matmul %0, %1, %cst {dimension_numbers = #tpu.dot_dimension_numbers<[1], [0], [0], [1], [0, 0, 1, 1], [], []>} : vector<16x32xf32>, vector<32x96xf32>, vector<16x96xf32> -> vector<16x96xf32>
    %c0_3 = arith.constant 0 : index
    %c0_4 = arith.constant 0 : index
    %3 = vector.load %arg3[%c0_3, %c0_4] : memref<1x96xf32, #tpu.memory_space<vmem>>, vector<1x96xf32>
    %4 = vector.broadcast %3 : vector<1x96xf32> to vector<16x96xf32>
    %5 = arith.addf %2, %4 : vector<16x96xf32>
    %6 = vector.extract_strided_slice %5 {offsets = [0, 0], sizes = [16, 32], strides = [1, 1]} : vector<16x96xf32> to vector<16x32xf32>
    %cst_5 = arith.constant 0.353553385 : f32
    %7 = vector.broadcast %cst_5 : f32 to vector<16x32xf32>
    %8 = arith.mulf %6, %7 : vector<16x32xf32>
    %9 = vector.extract_strided_slice %5 {offsets = [0, 32], sizes = [16, 32], strides = [1, 1]} : vector<16x96xf32> to vector<16x32xf32>
    %10 = vector.extract_strided_slice %5 {offsets = [0, 64], sizes = [16, 32], strides = [1, 1]} : vector<16x96xf32> to vector<16x32xf32>
    %11 = vector.shape_cast %8 : vector<16x32xf32> to vector<2x8x32xf32>
    %12 = vector.shape_cast %9 : vector<16x32xf32> to vector<2x8x32xf32>
    %13 = vector.shape_cast %10 : vector<16x32xf32> to vector<2x8x32xf32>
    %14 = tpu.iota {dimensions = array<i32: 1>} : vector<2x8x8xi32>
    %15 = tpu.iota {dimensions = array<i32: 2>} : vector<2x8x8xi32>
    %16 = arith.cmpi slt, %15, %14 : vector<2x8x8xi32>
    %17 = tpu.iota {dimensions = array<i32: 2>} : vector<1x1x32xi32>
    %cst_6 = arith.constant 0.000000e+00 : f32
    %18 = vector.broadcast %cst_6 : f32 to vector<2x8x32xf32>
    %c0_i32 = arith.constant 0 : i32
    %19 = vector.broadcast %c0_i32 : i32 to vector<1x1x32xi32>
    %20 = arith.cmpi sge, %17, %19 : vector<1x1x32xi32>
    %c8_i32 = arith.constant 8 : i32
    %21 = vector.broadcast %c8_i32 : i32 to vector<1x1x32xi32>
    %22 = arith.cmpi slt, %17, %21 : vector<1x1x32xi32>
    %23 = arith.andi %20, %22 : vector<1x1x32xi1>
    %24 = arith.extui %23 : vector<1x1x32xi1> to vector<1x1x32xi32>
    %25 = arith.sitofp %24 : vector<1x1x32xi32> to vector<1x1x32xf32>
    %26 = vector.broadcast %25 : vector<1x1x32xf32> to vector<2x8x32xf32>
    %27 = arith.mulf %11, %26 : vector<2x8x32xf32>
    %28 = vector.broadcast %25 : vector<1x1x32xf32> to vector<2x8x32xf32>
    %29 = arith.mulf %13, %28 : vector<2x8x32xf32>
    "tpu.trace_start"() <{level = 10 : i32, message = "bte,bse->bts"}> : () -> ()
    %cst_7 = arith.constant dense<0.000000e+00> : vector<2x8x8xf32>
    %30 = tpu.matmul %27, %12, %cst_7 {dimension_numbers = #tpu.dot_dimension_numbers<[2], [2], [1], [1], [0, 0, 0, 1, 1, 1], [0], [0]>} : vector<2x8x32xf32>, vector<2x8x32xf32>, vector<2x8x8xf32> -> vector<2x8x8xf32>
    %cst_8 = arith.constant -1.000000e+30 : f32
    "tpu.trace_stop"() : () -> ()
    %31 = vector.broadcast %cst_8 : f32 to vector<2x8x8xf32>
    %32 = arith.select %16, %30, %31 : vector<2x8x8xi1>, vector<2x8x8xf32>
    %cst_9 = arith.constant dense<0xFF800000> : vector<2x8xf32>
    %33 = vector.multi_reduction <maximumf>, %32, %cst_9 [2] : vector<2x8x8xf32> to vector<2x8xf32>
    %34 = vector.shape_cast %33 : vector<2x8xf32> to vector<2x8x1xf32>
    %cst_10 = arith.constant 0.000000e+00 : f32
    %35 = vector.broadcast %cst_10 : f32 to vector<2x8x1xf32>
    %36 = arith.maximumf %34, %35 : vector<2x8x1xf32>
    %37 = vector.broadcast %36 : vector<2x8x1xf32> to vector<2x8x8xf32>
    %38 = arith.subf %32, %37 : vector<2x8x8xf32>
    %39 = math.exp %38 : vector<2x8x8xf32>
    %cst_11 = arith.constant dense<0.000000e+00> : vector<2x8xf32>
    %40 = vector.multi_reduction <add>, %39, %cst_11 [2] : vector<2x8x8xf32> to vector<2x8xf32>
    %41 = vector.shape_cast %40 : vector<2x8xf32> to vector<2x8x1xf32>
    %cst_12 = arith.constant 0.000000e+00 : f32
    %42 = vector.broadcast %cst_12 : f32 to vector<2x8x1xf32>
    %43 = arith.subf %42, %36 : vector<2x8x1xf32>
    %44 = math.exp %43 : vector<2x8x1xf32>
    %45 = arith.addf %41, %44 : vector<2x8x1xf32>
    "tpu.trace_start"() <{level = 10 : i32, message = "bts,bse->bte"}> : () -> ()
    %cst_13 = arith.constant dense<0.000000e+00> : vector<2x8x32xf32>
    %46 = tpu.matmul %39, %29, %cst_13 {dimension_numbers = #tpu.dot_dimension_numbers<[2], [1], [1], [2], [0, 0, 0, 1, 1, 2], [0], [0]>} : vector<2x8x8xf32>, vector<2x8x32xf32>, vector<2x8x32xf32> -> vector<2x8x32xf32>
    "tpu.trace_stop"() : () -> ()
    %47 = vector.broadcast %45 : vector<2x8x1xf32> to vector<2x8x32xf32>
    %48 = arith.divf %46, %47 : vector<2x8x32xf32>
    %49 = arith.addf %18, %48 : vector<2x8x32xf32>
    %c8_i32_14 = arith.constant 8 : i32
    %50 = vector.broadcast %c8_i32_14 : i32 to vector<1x1x32xi32>
    %51 = arith.cmpi sge, %17, %50 : vector<1x1x32xi32>
    %c16_i32 = arith.constant 16 : i32
    %52 = vector.broadcast %c16_i32 : i32 to vector<1x1x32xi32>
    %53 = arith.cmpi slt, %17, %52 : vector<1x1x32xi32>
    %54 = arith.andi %51, %53 : vector<1x1x32xi1>
    %55 = arith.extui %54 : vector<1x1x32xi1> to vector<1x1x32xi32>
    %56 = arith.sitofp %55 : vector<1x1x32xi32> to vector<1x1x32xf32>
    %57 = vector.broadcast %56 : vector<1x1x32xf32> to vector<2x8x32xf32>
    %58 = arith.mulf %11, %57 : vector<2x8x32xf32>
    %59 = vector.broadcast %56 : vector<1x1x32xf32> to vector<2x8x32xf32>
    %60 = arith.mulf %13, %59 : vector<2x8x32xf32>
    "tpu.trace_start"() <{level = 10 : i32, message = "bte,bse->bts"}> : () -> ()
    %cst_15 = arith.constant dense<0.000000e+00> : vector<2x8x8xf32>
    %61 = tpu.matmul %58, %12, %cst_15 {dimension_numbers = #tpu.dot_dimension_numbers<[2], [2], [1], [1], [0, 0, 0, 1, 1, 1], [0], [0]>} : vector<2x8x32xf32>, vector<2x8x32xf32>, vector<2x8x8xf32> -> vector<2x8x8xf32>
    %cst_16 = arith.constant -1.000000e+30 : f32
    "tpu.trace_stop"() : () -> ()
    %62 = vector.broadcast %cst_16 : f32 to vector<2x8x8xf32>
    %63 = arith.select %16, %61, %62 : vector<2x8x8xi1>, vector<2x8x8xf32>
    %cst_17 = arith.constant dense<0xFF800000> : vector<2x8xf32>
    %64 = vector.multi_reduction <maximumf>, %63, %cst_17 [2] : vector<2x8x8xf32> to vector<2x8xf32>
    %65 = vector.shape_cast %64 : vector<2x8xf32> to vector<2x8x1xf32>
    %cst_18 = arith.constant 0.000000e+00 : f32
    %66 = vector.broadcast %cst_18 : f32 to vector<2x8x1xf32>
    %67 = arith.maximumf %65, %66 : vector<2x8x1xf32>
    %68 = vector.broadcast %67 : vector<2x8x1xf32> to vector<2x8x8xf32>
    %69 = arith.subf %63, %68 : vector<2x8x8xf32>
    %70 = math.exp %69 : vector<2x8x8xf32>
    %cst_19 = arith.constant dense<0.000000e+00> : vector<2x8xf32>
    %71 = vector.multi_reduction <add>, %70, %cst_19 [2] : vector<2x8x8xf32> to vector<2x8xf32>
    %72 = vector.shape_cast %71 : vector<2x8xf32> to vector<2x8x1xf32>
    %cst_20 = arith.constant 0.000000e+00 : f32
    %73 = vector.broadcast %cst_20 : f32 to vector<2x8x1xf32>
    %74 = arith.subf %73, %67 : vector<2x8x1xf32>
    %75 = math.exp %74 : vector<2x8x1xf32>
    %76 = arith.addf %72, %75 : vector<2x8x1xf32>
    "tpu.trace_start"() <{level = 10 : i32, message = "bts,bse->bte"}> : () -> ()
    %cst_21 = arith.constant dense<0.000000e+00> : vector<2x8x32xf32>
    %77 = tpu.matmul %70, %60, %cst_21 {dimension_numbers = #tpu.dot_dimension_numbers<[2], [1], [1], [2], [0, 0, 0, 1, 1, 2], [0], [0]>} : vector<2x8x8xf32>, vector<2x8x32xf32>, vector<2x8x32xf32> -> vector<2x8x32xf32>
    "tpu.trace_stop"() : () -> ()
    %78 = vector.broadcast %76 : vector<2x8x1xf32> to vector<2x8x32xf32>
    %79 = arith.divf %77, %78 : vector<2x8x32xf32>
    %80 = arith.addf %49, %79 : vector<2x8x32xf32>
    %c16_i32_22 = arith.constant 16 : i32
    %81 = vector.broadcast %c16_i32_22 : i32 to vector<1x1x32xi32>
    %82 = arith.cmpi sge, %17, %81 : vector<1x1x32xi32>
    %c24_i32 = arith.constant 24 : i32
    %83 = vector.broadcast %c24_i32 : i32 to vector<1x1x32xi32>
    %84 = arith.cmpi slt, %17, %83 : vector<1x1x32xi32>
    %85 = arith.andi %82, %84 : vector<1x1x32xi1>
    %86 = arith.extui %85 : vector<1x1x32xi1> to vector<1x1x32xi32>
    %87 = arith.sitofp %86 : vector<1x1x32xi32> to vector<1x1x32xf32>
    %88 = vector.broadcast %87 : vector<1x1x32xf32> to vector<2x8x32xf32>
    %89 = arith.mulf %11, %88 : vector<2x8x32xf32>
    %90 = vector.broadcast %87 : vector<1x1x32xf32> to vector<2x8x32xf32>
    %91 = arith.mulf %13, %90 : vector<2x8x32xf32>
    "tpu.trace_start"() <{level = 10 : i32, message = "bte,bse->bts"}> : () -> ()
    %cst_23 = arith.constant dense<0.000000e+00> : vector<2x8x8xf32>
    %92 = tpu.matmul %89, %12, %cst_23 {dimension_numbers = #tpu.dot_dimension_numbers<[2], [2], [1], [1], [0, 0, 0, 1, 1, 1], [0], [0]>} : vector<2x8x32xf32>, vector<2x8x32xf32>, vector<2x8x8xf32> -> vector<2x8x8xf32>
    %cst_24 = arith.constant -1.000000e+30 : f32
    "tpu.trace_stop"() : () -> ()
    %93 = vector.broadcast %cst_24 : f32 to vector<2x8x8xf32>
    %94 = arith.select %16, %92, %93 : vector<2x8x8xi1>, vector<2x8x8xf32>
    %cst_25 = arith.constant dense<0xFF800000> : vector<2x8xf32>
    %95 = vector.multi_reduction <maximumf>, %94, %cst_25 [2] : vector<2x8x8xf32> to vector<2x8xf32>
    %96 = vector.shape_cast %95 : vector<2x8xf32> to vector<2x8x1xf32>
    %cst_26 = arith.constant 0.000000e+00 : f32
    %97 = vector.broadcast %cst_26 : f32 to vector<2x8x1xf32>
    %98 = arith.maximumf %96, %97 : vector<2x8x1xf32>
    %99 = vector.broadcast %98 : vector<2x8x1xf32> to vector<2x8x8xf32>
    %100 = arith.subf %94, %99 : vector<2x8x8xf32>
    %101 = math.exp %100 : vector<2x8x8xf32>
    %cst_27 = arith.constant dense<0.000000e+00> : vector<2x8xf32>
    %102 = vector.multi_reduction <add>, %101, %cst_27 [2] : vector<2x8x8xf32> to vector<2x8xf32>
    %103 = vector.shape_cast %102 : vector<2x8xf32> to vector<2x8x1xf32>
    %cst_28 = arith.constant 0.000000e+00 : f32
    %104 = vector.broadcast %cst_28 : f32 to vector<2x8x1xf32>
    %105 = arith.subf %104, %98 : vector<2x8x1xf32>
    %106 = math.exp %105 : vector<2x8x1xf32>
    %107 = arith.addf %103, %106 : vector<2x8x1xf32>
    "tpu.trace_start"() <{level = 10 : i32, message = "bts,bse->bte"}> : () -> ()
    %cst_29 = arith.constant dense<0.000000e+00> : vector<2x8x32xf32>
    %108 = tpu.matmul %101, %91, %cst_29 {dimension_numbers = #tpu.dot_dimension_numbers<[2], [1], [1], [2], [0, 0, 0, 1, 1, 2], [0], [0]>} : vector<2x8x8xf32>, vector<2x8x32xf32>, vector<2x8x32xf32> -> vector<2x8x32xf32>
    "tpu.trace_stop"() : () -> ()
    %109 = vector.broadcast %107 : vector<2x8x1xf32> to vector<2x8x32xf32>
    %110 = arith.divf %108, %109 : vector<2x8x32xf32>
    %111 = arith.addf %80, %110 : vector<2x8x32xf32>
    %c24_i32_30 = arith.constant 24 : i32
    %112 = vector.broadcast %c24_i32_30 : i32 to vector<1x1x32xi32>
    %113 = arith.cmpi sge, %17, %112 : vector<1x1x32xi32>
    %c32_i32 = arith.constant 32 : i32
    %114 = vector.broadcast %c32_i32 : i32 to vector<1x1x32xi32>
    %115 = arith.cmpi slt, %17, %114 : vector<1x1x32xi32>
    %116 = arith.andi %113, %115 : vector<1x1x32xi1>
    %117 = arith.extui %116 : vector<1x1x32xi1> to vector<1x1x32xi32>
    %118 = arith.sitofp %117 : vector<1x1x32xi32> to vector<1x1x32xf32>
    %119 = vector.broadcast %118 : vector<1x1x32xf32> to vector<2x8x32xf32>
    %120 = arith.mulf %11, %119 : vector<2x8x32xf32>
    %121 = vector.broadcast %118 : vector<1x1x32xf32> to vector<2x8x32xf32>
    %122 = arith.mulf %13, %121 : vector<2x8x32xf32>
    "tpu.trace_start"() <{level = 10 : i32, message = "bte,bse->bts"}> : () -> ()
    %cst_31 = arith.constant dense<0.000000e+00> : vector<2x8x8xf32>
    %123 = tpu.matmul %120, %12, %cst_31 {dimension_numbers = #tpu.dot_dimension_numbers<[2], [2], [1], [1], [0, 0, 0, 1, 1, 1], [0], [0]>} : vector<2x8x32xf32>, vector<2x8x32xf32>, vector<2x8x8xf32> -> vector<2x8x8xf32>
    %cst_32 = arith.constant -1.000000e+30 : f32
    "tpu.trace_stop"() : () -> ()
    %124 = vector.broadcast %cst_32 : f32 to vector<2x8x8xf32>
    %125 = arith.select %16, %123, %124 : vector<2x8x8xi1>, vector<2x8x8xf32>
    %cst_33 = arith.constant dense<0xFF800000> : vector<2x8xf32>
    %126 = vector.multi_reduction <maximumf>, %125, %cst_33 [2] : vector<2x8x8xf32> to vector<2x8xf32>
    %127 = vector.shape_cast %126 : vector<2x8xf32> to vector<2x8x1xf32>
    %cst_34 = arith.constant 0.000000e+00 : f32
    %128 = vector.broadcast %cst_34 : f32 to vector<2x8x1xf32>
    %129 = arith.maximumf %127, %128 : vector<2x8x1xf32>
    %130 = vector.broadcast %129 : vector<2x8x1xf32> to vector<2x8x8xf32>
    %131 = arith.subf %125, %130 : vector<2x8x8xf32>
    %132 = math.exp %131 : vector<2x8x8xf32>
    %cst_35 = arith.constant dense<0.000000e+00> : vector<2x8xf32>
    %133 = vector.multi_reduction <add>, %132, %cst_35 [2] : vector<2x8x8xf32> to vector<2x8xf32>
    %134 = vector.shape_cast %133 : vector<2x8xf32> to vector<2x8x1xf32>
    %cst_36 = arith.constant 0.000000e+00 : f32
    %135 = vector.broadcast %cst_36 : f32 to vector<2x8x1xf32>
    %136 = arith.subf %135, %129 : vector<2x8x1xf32>
    %137 = math.exp %136 : vector<2x8x1xf32>
    %138 = arith.addf %134, %137 : vector<2x8x1xf32>
    "tpu.trace_start"() <{level = 10 : i32, message = "bts,bse->bte"}> : () -> ()
    %cst_37 = arith.constant dense<0.000000e+00> : vector<2x8x32xf32>
    %139 = tpu.matmul %132, %122, %cst_37 {dimension_numbers = #tpu.dot_dimension_numbers<[2], [1], [1], [2], [0, 0, 0, 1, 1, 2], [0], [0]>} : vector<2x8x8xf32>, vector<2x8x32xf32>, vector<2x8x32xf32> -> vector<2x8x32xf32>
    "tpu.trace_stop"() : () -> ()
    %140 = vector.broadcast %138 : vector<2x8x1xf32> to vector<2x8x32xf32>
    %141 = arith.divf %139, %140 : vector<2x8x32xf32>
    %142 = arith.addf %111, %141 : vector<2x8x32xf32>
    %143 = vector.shape_cast %142 : vector<2x8x32xf32> to vector<16x32xf32>
    %c0_38 = arith.constant 0 : index
    %c0_39 = arith.constant 0 : index
    %144 = vector.load %arg4[%c0_38, %c0_39] : memref<32x32xf32, #tpu.memory_space<vmem>>, vector<32x32xf32>
    %cst_40 = arith.constant dense<0.000000e+00> : vector<16x32xf32>
    %145 = tpu.matmul %143, %144, %cst_40 {dimension_numbers = #tpu.dot_dimension_numbers<[1], [0], [0], [1], [0, 0, 1, 1], [], []>} : vector<16x32xf32>, vector<32x32xf32>, vector<16x32xf32> -> vector<16x32xf32>
    %c0_41 = arith.constant 0 : index
    %c0_42 = arith.constant 0 : index
    %146 = vector.load %arg5[%c0_41, %c0_42] : memref<1x32xf32, #tpu.memory_space<vmem>>, vector<1x32xf32>
    %147 = vector.broadcast %146 : vector<1x32xf32> to vector<16x32xf32>
    %148 = arith.addf %145, %147 : vector<16x32xf32>
    %149 = arith.addf %148, %0 : vector<16x32xf32>
    %cst_43 = arith.constant dense<0.000000e+00> : vector<16xf32>
    %150 = vector.multi_reduction <add>, %149, %cst_43 [1] : vector<16x32xf32> to vector<16xf32>
    %151 = vector.shape_cast %150 : vector<16xf32> to vector<16x1xf32>
    %cst_44 = arith.constant 3.200000e+01 : f32
    %152 = vector.broadcast %cst_44 : f32 to vector<16x1xf32>
    %153 = arith.divf %151, %152 : vector<16x1xf32>
    %154 = vector.broadcast %153 : vector<16x1xf32> to vector<16x32xf32>
    %155 = arith.subf %149, %154 : vector<16x32xf32>
    %156 = arith.mulf %155, %155 : vector<16x32xf32>
    %cst_45 = arith.constant dense<0.000000e+00> : vector<16xf32>
    %157 = vector.multi_reduction <add>, %156, %cst_45 [1] : vector<16x32xf32> to vector<16xf32>
    %158 = vector.shape_cast %157 : vector<16xf32> to vector<16x1xf32>
    %cst_46 = arith.constant 3.200000e+01 : f32
    %159 = vector.broadcast %cst_46 : f32 to vector<16x1xf32>
    %160 = arith.divf %158, %159 : vector<16x1xf32>
    %161 = vector.broadcast %153 : vector<16x1xf32> to vector<16x32xf32>
    %162 = arith.subf %149, %161 : vector<16x32xf32>
    %cst_47 = arith.constant 9.99999974E-6 : f32
    %163 = vector.broadcast %cst_47 : f32 to vector<16x1xf32>
    %164 = arith.addf %160, %163 : vector<16x1xf32>
    %165 = math.rsqrt %164 : vector<16x1xf32>
    %166 = vector.broadcast %165 : vector<16x1xf32> to vector<16x32xf32>
    %167 = arith.mulf %162, %166 : vector<16x32xf32>
    %c0_48 = arith.constant 0 : index
    %c0_49 = arith.constant 0 : index
    %168 = vector.load %arg6[%c0_48, %c0_49] : memref<1x32xf32, #tpu.memory_space<vmem>>, vector<1x32xf32>
    %169 = vector.broadcast %168 : vector<1x32xf32> to vector<16x32xf32>
    %170 = arith.mulf %167, %169 : vector<16x32xf32>
    %c0_50 = arith.constant 0 : index
    %c0_51 = arith.constant 0 : index
    %171 = vector.load %arg7[%c0_50, %c0_51] : memref<1x32xf32, #tpu.memory_space<vmem>>, vector<1x32xf32>
    %172 = vector.broadcast %171 : vector<1x32xf32> to vector<16x32xf32>
    %173 = arith.addf %170, %172 : vector<16x32xf32>
    %c0_52 = arith.constant 0 : index
    %c0_53 = arith.constant 0 : index
    %174 = vector.load %arg8[%c0_52, %c0_53] : memref<16x32xf32, #tpu.memory_space<vmem>>, vector<16x32xf32>
    tpu.vector_store %arg8[%c0_52, %c0_53], %173 {strides = array<i32>} : memref<16x32xf32, #tpu.memory_space<vmem>>, vector<16x32xf32>,
    return
  }
  func.func @transform_0(%arg0: i32) -> (i32, i32) {
    %c0_i32 = arith.constant 0 : i32
    %c0_i32_0 = arith.constant 0 : i32
    return %arg0, %c0_i32 : i32, i32
  }
  func.func @transform_1(%arg0: i32) -> (i32, i32) {
    %c0_i32 = arith.constant 0 : i32
    %c0_i32_0 = arith.constant 0 : i32
    %c0_i32_1 = arith.constant 0 : i32
    return %c0_i32, %c0_i32_0 : i32, i32
  }
  func.func @transform_2(%arg0: i32) -> (i32, i32) {
    %c0_i32 = arith.constant 0 : i32
    %c0_i32_0 = arith.constant 0 : i32
    %c0_i32_1 = arith.constant 0 : i32
    return %c0_i32, %c0_i32_0 : i32, i32
  }
  func.func @transform_3(%arg0: i32) -> (i32, i32) {
    %c0_i32 = arith.constant 0 : i32
    %c0_i32_0 = arith.constant 0 : i32
    %c0_i32_1 = arith.constant 0 : i32
    return %c0_i32, %c0_i32_0 : i32, i32
  }
  func.func @transform_4(%arg0: i32) -> (i32, i32) {
    %c0_i32 = arith.constant 0 : i32
    %c0_i32_0 = arith.constant 0 : i32
    %c0_i32_1 = arith.constant 0 : i32
    return %c0_i32, %c0_i32_0 : i32, i32
  }
  func.func @transform_5(%arg0: i32) -> (i32, i32) {
    %c0_i32 = arith.constant 0 : i32
    %c0_i32_0 = arith.constant 0 : i32
    %c0_i32_1 = arith.constant 0 : i32
    return %c0_i32, %c0_i32_0 : i32, i32
  }
  func.func @transform_6(%arg0: i32) -> (i32, i32) {
    %c0_i32 = arith.constant 0 : i32
    %c0_i32_0 = arith.constant 0 : i32
    %c0_i32_1 = arith.constant 0 : i32
    return %c0_i32, %c0_i32_0 : i32, i32
  }
  func.func @transform_7(%arg0: i32) -> (i32, i32) {
    %c0_i32 = arith.constant 0 : i32
    %c0_i32_0 = arith.constant 0 : i32
    return %arg0, %c0_i32 : i32, i32
  }
}

</mosaic_0001>

<llo_original>
// kernel: tpu_custom_call.1
$region0: #{tpu_custom_call.1}
  #allocation0 [shape = 'u32[]', space=smem, size = 0x4, offset = 0x4, fixed_abs, tag = 'smem constant byte address 0x4 - core index']
  #allocation1 [shape = 'u32[72,128]{1,0:T(1,128)}', space=vmem, size = 0x9000, scoped, tag = 'internal scratch']
  %s0 = inlined_call_operand.hbm [shape: f32[16,32], index: 0, kind: input, shape index: {}]
  %s1 = inlined_call_operand.hbm [shape: f32[32,96], index: 1, kind: input, shape index: {}]
  %s2 = inlined_call_operand.vmem [shape: f32[1,96], index: 2, kind: input, shape index: {}]
  %s3 = inlined_call_operand.hbm [shape: f32[32,32], index: 3, kind: input, shape index: {}]
  %s4 = inlined_call_operand.vmem [shape: f32[1,32], index: 4, kind: input, shape index: {}]
  %s5 = inlined_call_operand.vmem [shape: f32[1,32], index: 5, kind: input, shape index: {}]
  %s6 = inlined_call_operand.vmem [shape: f32[1,32], index: 6, kind: input, shape index: {}]
  %s7 = inlined_call_operand.hbm [shape: f32[16,32], index: 7, kind: output, shape index: {}]
  %s8 = sld [smem:[#allocation0]]
  $region50: #{tpu_custom_call.1} parent=0
    _
  %s10 = ssub.s32 1, %s8
  %s11 = scalar_select 0, %s10, %s8
  $region1: #{tpu_custom_call.1} parent=0
    #allocation2 [shape = 'u8[8192]{0}', space=vmem, size = 0x2000, scoped, tag = 'input window, operand 0, single buffered']
    #allocation3 [shape = 's32[1]{0}', space=sflag, size = 0x4, scoped, tag = 'scoped memory for tpu_custom_call.1']
    #allocation4 [shape = 's32[1]{0}', space=sflag, size = 0x4, scoped, tag = 'scoped memory for tpu_custom_call.1']
    #allocation5 [shape = 'u8[16384]{0}', space=vmem, size = 0x4000, scoped, tag = 'input window, operand 1, single buffered']
    #allocation6 [shape = 's32[1]{0}', space=sflag, size = 0x4, scoped, tag = 'scoped memory for tpu_custom_call.1']
    #allocation7 [shape = 'u8[16384]{0}', space=vmem, size = 0x4000, scoped, tag = 'input window, operand 3, single buffered']
    #allocation8 [shape = 'u8[8192]{0}', space=vmem, size = 0x2000, scoped, tag = 'output window, operand 0, single buffered']
    %12 = vsyncpa [#allocation3], 0
    %13 = vsyncpa [#allocation6], 0
    %14 = vsyncpa [#allocation4], 0
    // Predicated region
    $region2: #{tpu_custom_call.1} parent=1 // pred_check
      _
    $region3: #{tpu_custom_call.1} parent=1 // pred_check_branch
      %16 = sbr.rel (0) target = $region5
    $region4: #{tpu_custom_call.1} parent=1 // pred_region
      %18 = vsyncadd [#allocation3], 0
      %s19 = sshll.u32 %s0, 4
      %s20 = int_to_ptr.hbm [resolvable:$true] %s19
      %s21 = sshll.u32 [#allocation2], 4
      %s22 = int_to_ptr.vmem [resolvable:$true] %s21
      %27 = dma.hbm_to_vmem [thread:$0]  %s20, 256, %s22, [#allocation3], 128, 128, 8
    $region5: #{tpu_custom_call.1} parent=1 // pred_fallthru
      _
    // Predicated region
    $region6: #{tpu_custom_call.1} parent=1 // pred_check
      _
    $region7: #{tpu_custom_call.1} parent=1 // pred_check_branch
      %29 = sbr.rel (0) target = $region9
    $region8: #{tpu_custom_call.1} parent=1 // pred_region
      %31 = vsyncadd [#allocation6], 0
      %s32 = sshll.u32 %s1, 4
      %s33 = int_to_ptr.hbm [resolvable:$true] %s32
      %s34 = sshll.u32 [#allocation5], 4
      %s35 = int_to_ptr.vmem [resolvable:$true] %s34
      %40 = dma.hbm_to_vmem [thread:$0]  %s33, 512, %s35, [#allocation6], 128, 128, 8
    $region9: #{tpu_custom_call.1} parent=1 // pred_fallthru
      _
    // Predicated region
    $region10: #{tpu_custom_call.1} parent=1 // pred_check
      _
    $region11: #{tpu_custom_call.1} parent=1 // pred_check_branch
      %42 = sbr.rel (0) target = $region13
    $region12: #{tpu_custom_call.1} parent=1 // pred_region
      _
    $region13: #{tpu_custom_call.1} parent=1 // pred_fallthru
      _
    // Predicated region
    $region14: #{tpu_custom_call.1} parent=1 // pred_check
      _
    $region15: #{tpu_custom_call.1} parent=1 // pred_check_branch
      %44 = sbr.rel (0) target = $region17
    $region16: #{tpu_custom_call.1} parent=1 // pred_region
      %46 = vsyncadd [#allocation6], 0
      %s47 = sshll.u32 %s3, 4
      %s48 = int_to_ptr.hbm [resolvable:$true] %s47
      %s49 = sshll.u32 [#allocation7], 4
      %s50 = int_to_ptr.vmem [resolvable:$true] %s49
      %55 = dma.hbm_to_vmem [thread:$0]  %s48, 512, %s50, [#allocation6], 128, 128, 8
    $region17: #{tpu_custom_call.1} parent=1 // pred_fallthru
      _
    // Predicated region
    $region18: #{tpu_custom_call.1} parent=1 // pred_check
      _
    $region19: #{tpu_custom_call.1} parent=1 // pred_check_branch
      %57 = sbr.rel (0) target = $region21
    $region20: #{tpu_custom_call.1} parent=1 // pred_region
      _
    $region21: #{tpu_custom_call.1} parent=1 // pred_fallthru
      _
    // Predicated region
    $region22: #{tpu_custom_call.1} parent=1 // pred_check
      _
    $region23: #{tpu_custom_call.1} parent=1 // pred_check_branch
      %59 = sbr.rel (0) target = $region25
    $region24: #{tpu_custom_call.1} parent=1 // pred_region
      _
    $region25: #{tpu_custom_call.1} parent=1 // pred_fallthru
      _
    // Predicated region
    $region26: #{tpu_custom_call.1} parent=1 // pred_check
      _
    $region27: #{tpu_custom_call.1} parent=1 // pred_check_branch
      %61 = sbr.rel (0) target = $region29
    $region28: #{tpu_custom_call.1} parent=1 // pred_region
      _
    $region29: #{tpu_custom_call.1} parent=1 // pred_fallthru
      _
    // Predicated region
    $region30: #{tpu_custom_call.1} parent=1 // pred_check
      _
    $region31: #{tpu_custom_call.1} parent=1 // pred_check_branch
      %63 = sbr.rel (0) target = $region33
    $region32: #{tpu_custom_call.1} parent=1 // pred_region
      %65 = dma.done [#allocation3], 256
    $region33: #{tpu_custom_call.1} parent=1 // pred_fallthru
      _
    // Predicated region
    $region34: #{tpu_custom_call.1} parent=1 // pred_check
      _
    $region35: #{tpu_custom_call.1} parent=1 // pred_check_branch
      %67 = sbr.rel (0) target = $region37
    $region36: #{tpu_custom_call.1} parent=1 // pred_region
      %69 = dma.done [#allocation6], 512
    $region37: #{tpu_custom_call.1} parent=1 // pred_fallthru
      _
    // Predicated region
    $region38: #{tpu_custom_call.1} parent=1 // pred_check
      _
    $region39: #{tpu_custom_call.1} parent=1 // pred_check_branch
      %71 = sbr.rel (0) target = $region41
    $region40: #{tpu_custom_call.1} parent=1 // pred_region
      %73 = dma.done [#allocation6], 512
    $region41: #{tpu_custom_call.1} parent=1 // pred_fallthru
      _
    %v74 = vld [vmem:[#allocation2] sm:$0xff]
    %v75 = vld [vmem:[#allocation2 + $0x8] sm:$0xff]
    %v76 = vld [vmem:[#allocation5] sm:$0xff]
    %v77 = vld [vmem:[#allocation5 + $0x8] sm:$0xff]
    %v78 = vld [vmem:[#allocation5 + $0x10] sm:$0xff]
    %v79 = vld [vmem:[#allocation5 + $0x18] sm:$0xff]
    %v80 = vld [vmem:[%s2] sm:$0x1]
    %v82 = vperm.slane %v80, 0
    %vm84 = vcmask 261120
    %v86 = vsel %vm84, %v74, 0
    %v89 = vsel %vm84, %v75, 0
    %91 = vmatpush.msra.mxu0 0.0
    %92 = vmatpush.msra.mxu0 0.0
    %93 = vmatpush.msra.mxu0 0.0
    %94 = vmatpush.msra.mxu0 0.0
    %95 = vmatpush.msra.mxu0 0.0
    %96 = vmatpush.msra.mxu0 0.0
    %97 = vmatpush.msra.mxu0 0.0
    %98 = vmatpush.msra.mxu0 0.0
    %99 = vmatpush.msra.mxu0 0.0
    %100 = vmatpush.msra.mxu0 0.0
    %101 = vmatpush.msra.mxu0 0.0
    %102 = vmatpush.msra.mxu0 0.0
    %103 = vmatpush.msra.mxu0 %v79
    %104 = vmatpush.msra.mxu0 %v78
    %105 = vmatpush.msra.mxu0 %v77
    %106 = vmatpush.msra.mxu0 %v76
    %107 = vmatmul.f32.gmra.mxu0 %v86
    %v108 = vpop.f32.mrf.mxu0
    %v109 = vadd.f32 %v82, %v108
    %110 = vmatmul.f32.gmra.mxu0 %v89
    %v111 = vpop.f32.mrf.mxu0
    %v112 = vadd.f32 %v82, %v111
    %113 = vdwg.mxu0
    %v114 = vmul.f32 %v109, 0.35355338
    %v115 = vmul.f32 %v112, 0.35355338
    %v116 = vlaneseq
    %v117 = vshrl.u32 %v116, 7
    %v118 = vlaneseq
    %v119 = vand.u32 %v118, 127
    %vm120 = vcmp.lt.s32.totalorder %v119, %v117
    %vm121 = vcmp.ge.s32.totalorder %v119, 0
    %vm122 = vcmp.lt.s32.totalorder %v119, 8
    %vm123 = vmand %vm121, %vm122
    %v124 = vsel %vm123, 1, 0
    %v125 = vcvt.s32.f32 %v124
    %v126 = vmul.f32 %v114, %v125
    %v127 = vmul.f32 %v115, %v125
    %129 = vrot.lane.b32.xlu0 %v125, 64
    %v130 = vpop.permute.xlu0 %129
    %v132 = vmul.f32 %v109, %v130
    %v133 = vmul.f32 %v112, %v130
    %135 = vrot.lane.b32.xlu0 %v109, 96
    %v136 = vpop.permute.xlu0 %135
    %v138 = vsel %vm84, %v126, 0
    %v140 = vsel %vm84, %v136, 0
    %142 = vmatpush.xpose.msra.mxu0 0.0
    %143 = vmatpush.xpose.msra.mxu0 0.0
    %144 = vmatpush.xpose.msra.mxu0 0.0
    %145 = vmatpush.xpose.msra.mxu0 0.0
    %146 = vmatpush.xpose.msra.mxu0 0.0
    %147 = vmatpush.xpose.msra.mxu0 0.0
    %148 = vmatpush.xpose.msra.mxu0 0.0
    %149 = vmatpush.xpose.msra.mxu0 0.0
    %150 = vmatpush.xpose.msra.mxu0 0.0
    %151 = vmatpush.xpose.msra.mxu0 0.0
    %152 = vmatpush.xpose.msra.mxu0 0.0
    %153 = vmatpush.xpose.msra.mxu0 0.0
    %154 = vmatpush.xpose.msra.mxu0 0.0
    %155 = vmatpush.xpose.msra.mxu0 0.0
    %156 = vmatpush.xpose.msra.mxu0 0.0
    %157 = vmatpush.xpose.msra.mxu0 %v140
    %158 = vmatmul.f32.gmra.mxu0 %v138
    %v159 = vpop.f32.mrf.mxu0
    %v160 = vadd.f32 0.0, %v159
    %161 = vdwg.mxu0
    %163 = vrot.lane.b32.xlu0 %v112, 96
    %v164 = vpop.permute.xlu0 %163
    %v166 = vsel %vm84, %v127, 0
    %v168 = vsel %vm84, %v164, 0
    %170 = vmatpush.xpose.msra.mxu0 0.0
    %171 = vmatpush.xpose.msra.mxu0 0.0
    %172 = vmatpush.xpose.msra.mxu0 0.0
    %173 = vmatpush.xpose.msra.mxu0 0.0
    %174 = vmatpush.xpose.msra.mxu0 0.0
    %175 = vmatpush.xpose.msra.mxu0 0.0
    %176 = vmatpush.xpose.msra.mxu0 0.0
    %177 = vmatpush.xpose.msra.mxu0 0.0
    %178 = vmatpush.xpose.msra.mxu0 0.0
    %179 = vmatpush.xpose.msra.mxu0 0.0
    %180 = vmatpush.xpose.msra.mxu0 0.0
    %181 = vmatpush.xpose.msra.mxu0 0.0
    %182 = vmatpush.xpose.msra.mxu0 0.0
    %183 = vmatpush.xpose.msra.mxu0 0.0
    %184 = vmatpush.xpose.msra.mxu0 0.0
    %185 = vmatpush.xpose.msra.mxu0 %v168
    %186 = vmatmul.f32.gmra.mxu0 %v166
    %v187 = vpop.f32.mrf.mxu0
    %v188 = vadd.f32 0.0, %v187
    %189 = vdwg.mxu0
    %v190 = vsel %vm120, %v160, -1e+30
    %v191 = vsel %vm120, %v188, -1e+30
    %vm192 = vcmask 64512
    %v193 = vsel %vm192, %v190, -inf
    %194 = vmax.xlane.f32.xlu0 %v193
    %v195 = vpop.xlane.xlu0 %194
    %v196 = vsel %vm192, %v191, -inf
    %197 = vmax.xlane.f32.xlu0 %v196
    %v198 = vpop.xlane.xlu0 %197
    %v199 = vmax.f32 %v195, 0.0
    %v200 = vmax.f32 %v198, 0.0
    %v201 = vsub.f32 %v190, %v199
    %v202 = vsub.f32 %v191, %v200
    %v203 = vmul.f32 %v201, 1.442695
    %v204 = vpow.pop %v203
    %v205 = vmul.f32 %v202, 1.442695
    %v206 = vpow.pop %v205
    %v207 = vsel %vm192, %v204, 0.0
    %208 = vadd.xlane.f32.xlu0 %v207
    %v209 = vpop.xlane.xlu0 %208
    %v210 = vsel %vm192, %v206, 0.0
    %211 = vadd.xlane.f32.xlu0 %v210
    %v212 = vpop.xlane.xlu0 %211
    %v213 = vsub.f32 0.0, %v199
    %v214 = vsub.f32 0.0, %v200
    %v215 = vmul.f32 %v213, 1.442695
    %v216 = vpow.pop %v215
    %v217 = vmul.f32 %v214, 1.442695
    %v218 = vpow.pop %v217
    %v219 = vadd.f32 %v209, %v216
    %v220 = vadd.f32 %v212, %v218
    %222 = vrot.lane.b32.xlu0 %v132, 64
    %v223 = vpop.permute.xlu0 %222
    %v226 = vsel %vm192, %v204, 0
    %228 = vmatpush.msra.mxu0 0.0
    %229 = vmatpush.msra.mxu0 0.0
    %230 = vmatpush.msra.mxu0 0.0
    %231 = vmatpush.msra.mxu0 0.0
    %232 = vmatpush.msra.mxu0 0.0
    %233 = vmatpush.msra.mxu0 0.0
    %234 = vmatpush.msra.mxu0 0.0
    %235 = vmatpush.msra.mxu0 0.0
    %236 = vmatpush.msra.mxu0 0.0
    %237 = vmatpush.msra.mxu0 0.0
    %238 = vmatpush.msra.mxu0 0.0
    %239 = vmatpush.msra.mxu0 0.0
    %240 = vmatpush.msra.mxu0 0.0
    %241 = vmatpush.msra.mxu0 0.0
    %242 = vmatpush.msra.mxu0 0.0
    %243 = vmatpush.msra.mxu0 %v223
    %244 = vmatmul.f32.gmra.mxu0 %v226
    %v245 = vpop.f32.mrf.mxu0
    %v246 = vadd.f32 0.0, %v245
    %247 = vdwg.mxu0
    %249 = vrot.lane.b32.xlu0 %v133, 64
    %v250 = vpop.permute.xlu0 %249
    %v253 = vsel %vm192, %v206, 0
    %255 = vmatpush.msra.mxu0 0.0
    %256 = vmatpush.msra.mxu0 0.0
    %257 = vmatpush.msra.mxu0 0.0
    %258 = vmatpush.msra.mxu0 0.0
    %259 = vmatpush.msra.mxu0 0.0
    %260 = vmatpush.msra.mxu0 0.0
    %261 = vmatpush.msra.mxu0 0.0
    %262 = vmatpush.msra.mxu0 0.0
    %263 = vmatpush.msra.mxu0 0.0
    %264 = vmatpush.msra.mxu0 0.0
    %265 = vmatpush.msra.mxu0 0.0
    %266 = vmatpush.msra.mxu0 0.0
    %267 = vmatpush.msra.mxu0 0.0
    %268 = vmatpush.msra.mxu0 0.0
    %269 = vmatpush.msra.mxu0 0.0
    %270 = vmatpush.msra.mxu0 %v250
    %271 = vmatmul.f32.gmra.mxu0 %v253
    %v272 = vpop.f32.mrf.mxu0
    %v273 = vadd.f32 0.0, %v272
    %274 = vdwg.mxu0
    %v275 = vrcp.pop %v219
    %v276 = vmul.f32 %v219, %v275
    %v277 = vsub.f32 1.0, %v276
    %v278 = vmul.f32 %v275, %v277
    %v279 = vadd.f32 %v275, %v278
    %vm280 = vweird.f32 %v219
    %vm281 = vweird.f32 %v275
    %vm282 = vmor %vm280, %vm281
    %v283 = vsel %vm282, %v275, %v279
    %v284 = vand.u32 2147483647, %v219
    %vm285 = vcmp.eq.f32.partialorder %v284, 8.507059e+37
    %v286 = vand.u32 %v219, 2147483648
    %v287 = vor.u32 1.1754944e-38, %v286
    %v288 = vsel %vm285, %v287, %v283
    %v289 = vmul.f32 %v246, %v288
    %v290 = vrcp.pop %v220
    %v291 = vmul.f32 %v220, %v290
    %v292 = vsub.f32 1.0, %v291
    %v293 = vmul.f32 %v290, %v292
    %v294 = vadd.f32 %v290, %v293
    %vm295 = vweird.f32 %v220
    %vm296 = vweird.f32 %v290
    %vm297 = vmor %vm295, %vm296
    %v298 = vsel %vm297, %v290, %v294
    %v299 = vand.u32 2147483647, %v220
    %vm300 = vcmp.eq.f32.partialorder %v299, 8.507059e+37
    %v301 = vand.u32 %v220, 2147483648
    %v302 = vor.u32 1.1754944e-38, %v301
    %v303 = vsel %vm300, %v302, %v298
    %v304 = vmul.f32 %v273, %v303
    %v305 = vadd.f32 %v289, 0.0
    %v306 = vadd.f32 %v304, 0.0
    %vm307 = vcmp.ge.s32.totalorder %v119, 8
    %vm308 = vcmp.lt.s32.totalorder %v119, 16
    %vm309 = vmand %vm307, %vm308
    %v310 = vsel %vm309, 1, 0
    %v311 = vcvt.s32.f32 %v310
    %v312 = vmul.f32 %v114, %v311
    %v313 = vmul.f32 %v115, %v311
    %315 = vrot.lane.b32.xlu0 %v311, 64
    %v316 = vpop.permute.xlu0 %315
    %v318 = vmul.f32 %v109, %v316
    %v319 = vmul.f32 %v112, %v316
    %v321 = vsel %vm84, %v312, 0
    %323 = vmatpush.xpose.msra.mxu0 0.0
    %324 = vmatpush.xpose.msra.mxu0 0.0
    %325 = vmatpush.xpose.msra.mxu0 0.0
    %326 = vmatpush.xpose.msra.mxu0 0.0
    %327 = vmatpush.xpose.msra.mxu0 0.0
    %328 = vmatpush.xpose.msra.mxu0 0.0
    %329 = vmatpush.xpose.msra.mxu0 0.0
    %330 = vmatpush.xpose.msra.mxu0 0.0
    %331 = vmatpush.xpose.msra.mxu0 0.0
    %332 = vmatpush.xpose.msra.mxu0 0.0
    %333 = vmatpush.xpose.msra.mxu0 0.0
    %334 = vmatpush.xpose.msra.mxu0 0.0
    %335 = vmatpush.xpose.msra.mxu0 0.0
    %336 = vmatpush.xpose.msra.mxu0 0.0
    %337 = vmatpush.xpose.msra.mxu0 0.0
    %338 = vmatpush.xpose.msra.mxu0 %v140
    %339 = vmatmul.f32.gmra.mxu0 %v321
    %v340 = vpop.f32.mrf.mxu0
    %v341 = vadd.f32 0.0, %v340
    %342 = vdwg.mxu0
    %v344 = vsel %vm84, %v313, 0
    %346 = vmatpush.xpose.msra.mxu0 0.0
    %347 = vmatpush.xpose.msra.mxu0 0.0
    %348 = vmatpush.xpose.msra.mxu0 0.0
    %349 = vmatpush.xpose.msra.mxu0 0.0
    %350 = vmatpush.xpose.msra.mxu0 0.0
    %351 = vmatpush.xpose.msra.mxu0 0.0
    %352 = vmatpush.xpose.msra.mxu0 0.0
    %353 = vmatpush.xpose.msra.mxu0 0.0
    %354 = vmatpush.xpose.msra.mxu0 0.0
    %355 = vmatpush.xpose.msra.mxu0 0.0
    %356 = vmatpush.xpose.msra.mxu0 0.0
    %357 = vmatpush.xpose.msra.mxu0 0.0
    %358 = vmatpush.xpose.msra.mxu0 0.0
    %359 = vmatpush.xpose.msra.mxu0 0.0
    %360 = vmatpush.xpose.msra.mxu0 0.0
    %361 = vmatpush.xpose.msra.mxu0 %v168
    %362 = vmatmul.f32.gmra.mxu0 %v344
    %v363 = vpop.f32.mrf.mxu0
    %v364 = vadd.f32 0.0, %v363
    %365 = vdwg.mxu0
    %v366 = vsel %vm120, %v341, -1e+30
    %v367 = vsel %vm120, %v364, -1e+30
    %v368 = vsel %vm192, %v366, -inf
    %369 = vmax.xlane.f32.xlu0 %v368
    %v370 = vpop.xlane.xlu0 %369
    %v371 = vsel %vm192, %v367, -inf
    %372 = vmax.xlane.f32.xlu0 %v371
    %v373 = vpop.xlane.xlu0 %372
    %v374 = vmax.f32 %v370, 0.0
    %v375 = vmax.f32 %v373, 0.0
    %v376 = vsub.f32 %v366, %v374
    %v377 = vsub.f32 %v367, %v375
    %v378 = vmul.f32 %v376, 1.442695
    %v379 = vpow.pop %v378
    %v380 = vmul.f32 %v377, 1.442695
    %v381 = vpow.pop %v380
    %v382 = vsel %vm192, %v379, 0.0
    %383 = vadd.xlane.f32.xlu0 %v382
    %v384 = vpop.xlane.xlu0 %383
    %v385 = vsel %vm192, %v381, 0.0
    %386 = vadd.xlane.f32.xlu0 %v385
    %v387 = vpop.xlane.xlu0 %386
    %v388 = vsub.f32 0.0, %v374
    %v389 = vsub.f32 0.0, %v375
    %v390 = vmul.f32 %v388, 1.442695
    %v391 = vpow.pop %v390
    %v392 = vmul.f32 %v389, 1.442695
    %v393 = vpow.pop %v392
    %v394 = vadd.f32 %v384, %v391
    %v395 = vadd.f32 %v387, %v393
    %397 = vrot.lane.b32.xlu0 %v318, 64
    %v398 = vpop.permute.xlu0 %397
    %v401 = vsel %vm192, %v379, 0
    %403 = vmatpush.msra.mxu0 0.0
    %404 = vmatpush.msra.mxu0 0.0
    %405 = vmatpush.msra.mxu0 0.0
    %406 = vmatpush.msra.mxu0 0.0
    %407 = vmatpush.msra.mxu0 0.0
    %408 = vmatpush.msra.mxu0 0.0
    %409 = vmatpush.msra.mxu0 0.0
    %410 = vmatpush.msra.mxu0 0.0
    %411 = vmatpush.msra.mxu0 0.0
    %412 = vmatpush.msra.mxu0 0.0
    %413 = vmatpush.msra.mxu0 0.0
    %414 = vmatpush.msra.mxu0 0.0
    %415 = vmatpush.msra.mxu0 0.0
    %416 = vmatpush.msra.mxu0 0.0
    %417 = vmatpush.msra.mxu0 0.0
    %418 = vmatpush.msra.mxu0 %v398
    %419 = vmatmul.f32.gmra.mxu0 %v401
    %v420 = vpop.f32.mrf.mxu0
    %v421 = vadd.f32 0.0, %v420
    %422 = vdwg.mxu0
    %424 = vrot.lane.b32.xlu0 %v319, 64
    %v425 = vpop.permute.xlu0 %424
    %v428 = vsel %vm192, %v381, 0
    %430 = vmatpush.msra.mxu0 0.0
    %431 = vmatpush.msra.mxu0 0.0
    %432 = vmatpush.msra.mxu0 0.0
    %433 = vmatpush.msra.mxu0 0.0
    %434 = vmatpush.msra.mxu0 0.0
    %435 = vmatpush.msra.mxu0 0.0
    %436 = vmatpush.msra.mxu0 0.0
    %437 = vmatpush.msra.mxu0 0.0
    %438 = vmatpush.msra.mxu0 0.0
    %439 = vmatpush.msra.mxu0 0.0
    %440 = vmatpush.msra.mxu0 0.0
    %441 = vmatpush.msra.mxu0 0.0
    %442 = vmatpush.msra.mxu0 0.0
    %443 = vmatpush.msra.mxu0 0.0
    %444 = vmatpush.msra.mxu0 0.0
    %445 = vmatpush.msra.mxu0 %v425
    %446 = vmatmul.f32.gmra.mxu0 %v428
    %v447 = vpop.f32.mrf.mxu0
    %v448 = vadd.f32 0.0, %v447
    %449 = vdwg.mxu0
    %v450 = vrcp.pop %v394
    %v451 = vmul.f32 %v394, %v450
    %v452 = vsub.f32 1.0, %v451
    %v453 = vmul.f32 %v450, %v452
    %v454 = vadd.f32 %v450, %v453
    %vm455 = vweird.f32 %v394
    %vm456 = vweird.f32 %v450
    %vm457 = vmor %vm455, %vm456
    %v458 = vsel %vm457, %v450, %v454
    %v459 = vand.u32 2147483647, %v394
    %vm460 = vcmp.eq.f32.partialorder %v459, 8.507059e+37
    %v461 = vand.u32 %v394, 2147483648
    %v462 = vor.u32 1.1754944e-38, %v461
    %v463 = vsel %vm460, %v462, %v458
    %v464 = vmul.f32 %v421, %v463
    %v465 = vrcp.pop %v395
    %v466 = vmul.f32 %v395, %v465
    %v467 = vsub.f32 1.0, %v466
    %v468 = vmul.f32 %v465, %v467
    %v469 = vadd.f32 %v465, %v468
    %vm470 = vweird.f32 %v395
    %vm471 = vweird.f32 %v465
    %vm472 = vmor %vm470, %vm471
    %v473 = vsel %vm472, %v465, %v469
    %v474 = vand.u32 2147483647, %v395
    %vm475 = vcmp.eq.f32.partialorder %v474, 8.507059e+37
    %v476 = vand.u32 %v395, 2147483648
    %v477 = vor.u32 1.1754944e-38, %v476
    %v478 = vsel %vm475, %v477, %v473
    %v479 = vmul.f32 %v448, %v478
    %v480 = vadd.f32 %v305, %v464
    %v481 = vadd.f32 %v306, %v479
    %vm482 = vcmp.ge.s32.totalorder %v119, 16
    %vm483 = vcmp.lt.s32.totalorder %v119, 24
    %vm484 = vmand %vm482, %vm483
    %v485 = vsel %vm484, 1, 0
    %v486 = vcvt.s32.f32 %v485
    %v487 = vmul.f32 %v114, %v486
    %v488 = vmul.f32 %v115, %v486
    %490 = vrot.lane.b32.xlu0 %v486, 64
    %v491 = vpop.permute.xlu0 %490
    %v493 = vmul.f32 %v109, %v491
    %v494 = vmul.f32 %v112, %v491
    %v496 = vsel %vm84, %v487, 0
    %498 = vmatpush.xpose.msra.mxu0 0.0
    %499 = vmatpush.xpose.msra.mxu0 0.0
    %500 = vmatpush.xpose.msra.mxu0 0.0
    %501 = vmatpush.xpose.msra.mxu0 0.0
    %502 = vmatpush.xpose.msra.mxu0 0.0
    %503 = vmatpush.xpose.msra.mxu0 0.0
    %504 = vmatpush.xpose.msra.mxu0 0.0
    %505 = vmatpush.xpose.msra.mxu0 0.0
    %506 = vmatpush.xpose.msra.mxu0 0.0
    %507 = vmatpush.xpose.msra.mxu0 0.0
    %508 = vmatpush.xpose.msra.mxu0 0.0
    %509 = vmatpush.xpose.msra.mxu0 0.0
    %510 = vmatpush.xpose.msra.mxu0 0.0
    %511 = vmatpush.xpose.msra.mxu0 0.0
    %512 = vmatpush.xpose.msra.mxu0 0.0
    %513 = vmatpush.xpose.msra.mxu0 %v140
    %514 = vmatmul.f32.gmra.mxu0 %v496
    %v515 = vpop.f32.mrf.mxu0
    %v516 = vadd.f32 0.0, %v515
    %517 = vdwg.mxu0
    %v519 = vsel %vm84, %v488, 0
    %521 = vmatpush.xpose.msra.mxu0 0.0
    %522 = vmatpush.xpose.msra.mxu0 0.0
    %523 = vmatpush.xpose.msra.mxu0 0.0
    %524 = vmatpush.xpose.msra.mxu0 0.0
    %525 = vmatpush.xpose.msra.mxu0 0.0
    %526 = vmatpush.xpose.msra.mxu0 0.0
    %527 = vmatpush.xpose.msra.mxu0 0.0
    %528 = vmatpush.xpose.msra.mxu0 0.0
    %529 = vmatpush.xpose.msra.mxu0 0.0
    %530 = vmatpush.xpose.msra.mxu0 0.0
    %531 = vmatpush.xpose.msra.mxu0 0.0
    %532 = vmatpush.xpose.msra.mxu0 0.0
    %533 = vmatpush.xpose.msra.mxu0 0.0
    %534 = vmatpush.xpose.msra.mxu0 0.0
    %535 = vmatpush.xpose.msra.mxu0 0.0
    %536 = vmatpush.xpose.msra.mxu0 %v168
    %537 = vmatmul.f32.gmra.mxu0 %v519
    %v538 = vpop.f32.mrf.mxu0
    %v539 = vadd.f32 0.0, %v538
    %540 = vdwg.mxu0
    %v541 = vsel %vm120, %v516, -1e+30
    %v542 = vsel %vm120, %v539, -1e+30
    %v543 = vsel %vm192, %v541, -inf
    %544 = vmax.xlane.f32.xlu0 %v543
    %v545 = vpop.xlane.xlu0 %544
    %v546 = vsel %vm192, %v542, -inf
    %547 = vmax.xlane.f32.xlu0 %v546
    %v548 = vpop.xlane.xlu0 %547
    %v549 = vmax.f32 %v545, 0.0
    %v550 = vmax.f32 %v548, 0.0
    %v551 = vsub.f32 %v541, %v549
    %v552 = vsub.f32 %v542, %v550
    %v553 = vmul.f32 %v551, 1.442695
    %v554 = vpow.pop %v553
    %v555 = vmul.f32 %v552, 1.442695
    %v556 = vpow.pop %v555
    %v557 = vsel %vm192, %v554, 0.0
    %558 = vadd.xlane.f32.xlu0 %v557
    %v559 = vpop.xlane.xlu0 %558
    %v560 = vsel %vm192, %v556, 0.0
    %561 = vadd.xlane.f32.xlu0 %v560
    %v562 = vpop.xlane.xlu0 %561
    %v563 = vsub.f32 0.0, %v549
    %v564 = vsub.f32 0.0, %v550
    %v565 = vmul.f32 %v563, 1.442695
    %v566 = vpow.pop %v565
    %v567 = vmul.f32 %v564, 1.442695
    %v568 = vpow.pop %v567
    %v569 = vadd.f32 %v559, %v566
    %v570 = vadd.f32 %v562, %v568
    %572 = vrot.lane.b32.xlu0 %v493, 64
    %v573 = vpop.permute.xlu0 %572
    %v576 = vsel %vm192, %v554, 0
    %578 = vmatpush.msra.mxu0 0.0
    %579 = vmatpush.msra.mxu0 0.0
    %580 = vmatpush.msra.mxu0 0.0
    %581 = vmatpush.msra.mxu0 0.0
    %582 = vmatpush.msra.mxu0 0.0
    %583 = vmatpush.msra.mxu0 0.0
    %584 = vmatpush.msra.mxu0 0.0
    %585 = vmatpush.msra.mxu0 0.0
    %586 = vmatpush.msra.mxu0 0.0
    %587 = vmatpush.msra.mxu0 0.0
    %588 = vmatpush.msra.mxu0 0.0
    %589 = vmatpush.msra.mxu0 0.0
    %590 = vmatpush.msra.mxu0 0.0
    %591 = vmatpush.msra.mxu0 0.0
    %592 = vmatpush.msra.mxu0 0.0
    %593 = vmatpush.msra.mxu0 %v573
    %594 = vmatmul.f32.gmra.mxu0 %v576
    %v595 = vpop.f32.mrf.mxu0
    %v596 = vadd.f32 0.0, %v595
    %597 = vdwg.mxu0
    %599 = vrot.lane.b32.xlu0 %v494, 64
    %v600 = vpop.permute.xlu0 %599
    %v603 = vsel %vm192, %v556, 0
    %605 = vmatpush.msra.mxu0 0.0
    %606 = vmatpush.msra.mxu0 0.0
    %607 = vmatpush.msra.mxu0 0.0
    %608 = vmatpush.msra.mxu0 0.0
    %609 = vmatpush.msra.mxu0 0.0
    %610 = vmatpush.msra.mxu0 0.0
    %611 = vmatpush.msra.mxu0 0.0
    %612 = vmatpush.msra.mxu0 0.0
    %613 = vmatpush.msra.mxu0 0.0
    %614 = vmatpush.msra.mxu0 0.0
    %615 = vmatpush.msra.mxu0 0.0
    %616 = vmatpush.msra.mxu0 0.0
    %617 = vmatpush.msra.mxu0 0.0
    %618 = vmatpush.msra.mxu0 0.0
    %619 = vmatpush.msra.mxu0 0.0
    %620 = vmatpush.msra.mxu0 %v600
    %621 = vmatmul.f32.gmra.mxu0 %v603
    %v622 = vpop.f32.mrf.mxu0
    %v623 = vadd.f32 0.0, %v622
    %624 = vdwg.mxu0
    %v625 = vrcp.pop %v569
    %v626 = vmul.f32 %v569, %v625
    %v627 = vsub.f32 1.0, %v626
    %v628 = vmul.f32 %v625, %v627
    %v629 = vadd.f32 %v625, %v628
    %vm630 = vweird.f32 %v569
    %vm631 = vweird.f32 %v625
    %vm632 = vmor %vm630, %vm631
    %v633 = vsel %vm632, %v625, %v629
    %v634 = vand.u32 2147483647, %v569
    %vm635 = vcmp.eq.f32.partialorder %v634, 8.507059e+37
    %v636 = vand.u32 %v569, 2147483648
    %v637 = vor.u32 1.1754944e-38, %v636
    %v638 = vsel %vm635, %v637, %v633
    %v639 = vmul.f32 %v596, %v638
    %v640 = vrcp.pop %v570
    %v641 = vmul.f32 %v570, %v640
    %v642 = vsub.f32 1.0, %v641
    %v643 = vmul.f32 %v640, %v642
    %v644 = vadd.f32 %v640, %v643
    %vm645 = vweird.f32 %v570
    %vm646 = vweird.f32 %v640
    %vm647 = vmor %vm645, %vm646
    %v648 = vsel %vm647, %v640, %v644
    %v649 = vand.u32 2147483647, %v570
    %vm650 = vcmp.eq.f32.partialorder %v649, 8.507059e+37
    %v651 = vand.u32 %v570, 2147483648
    %v652 = vor.u32 1.1754944e-38, %v651
    %v653 = vsel %vm650, %v652, %v648
    %v654 = vmul.f32 %v623, %v653
    %v655 = vadd.f32 %v480, %v639
    %v656 = vadd.f32 %v481, %v654
    %vm657 = vcmp.ge.s32.totalorder %v119, 24
    %vm658 = vcmp.lt.s32.totalorder %v119, 32
    %vm659 = vmand %vm657, %vm658
    %v660 = vsel %vm659, 1, 0
    %v661 = vcvt.s32.f32 %v660
    %v662 = vmul.f32 %v114, %v661
    %v663 = vmul.f32 %v115, %v661
    %665 = vrot.lane.b32.xlu0 %v661, 64
    %v666 = vpop.permute.xlu0 %665
    %v668 = vmul.f32 %v109, %v666
    %v669 = vmul.f32 %v112, %v666
    %v671 = vsel %vm84, %v662, 0
    %673 = vmatpush.xpose.msra.mxu0 0.0
    %674 = vmatpush.xpose.msra.mxu0 0.0
    %675 = vmatpush.xpose.msra.mxu0 0.0
    %676 = vmatpush.xpose.msra.mxu0 0.0
    %677 = vmatpush.xpose.msra.mxu0 0.0
    %678 = vmatpush.xpose.msra.mxu0 0.0
    %679 = vmatpush.xpose.msra.mxu0 0.0
    %680 = vmatpush.xpose.msra.mxu0 0.0
    %681 = vmatpush.xpose.msra.mxu0 0.0
    %682 = vmatpush.xpose.msra.mxu0 0.0
    %683 = vmatpush.xpose.msra.mxu0 0.0
    %684 = vmatpush.xpose.msra.mxu0 0.0
    %685 = vmatpush.xpose.msra.mxu0 0.0
    %686 = vmatpush.xpose.msra.mxu0 0.0
    %687 = vmatpush.xpose.msra.mxu0 0.0
    %688 = vmatpush.xpose.msra.mxu0 %v140
    %689 = vmatmul.f32.gmra.mxu0 %v671
    %v690 = vpop.f32.mrf.mxu0
    %v691 = vadd.f32 0.0, %v690
    %692 = vdwg.mxu0
    %v694 = vsel %vm84, %v663, 0
    %696 = vmatpush.xpose.msra.mxu0 0.0
    %697 = vmatpush.xpose.msra.mxu0 0.0
    %698 = vmatpush.xpose.msra.mxu0 0.0
    %699 = vmatpush.xpose.msra.mxu0 0.0
    %700 = vmatpush.xpose.msra.mxu0 0.0
    %701 = vmatpush.xpose.msra.mxu0 0.0
    %702 = vmatpush.xpose.msra.mxu0 0.0
    %703 = vmatpush.xpose.msra.mxu0 0.0
    %704 = vmatpush.xpose.msra.mxu0 0.0
    %705 = vmatpush.xpose.msra.mxu0 0.0
    %706 = vmatpush.xpose.msra.mxu0 0.0
    %707 = vmatpush.xpose.msra.mxu0 0.0
    %708 = vmatpush.xpose.msra.mxu0 0.0
    %709 = vmatpush.xpose.msra.mxu0 0.0
    %710 = vmatpush.xpose.msra.mxu0 0.0
    %711 = vmatpush.xpose.msra.mxu0 %v168
    %712 = vmatmul.f32.gmra.mxu0 %v694
    %v713 = vpop.f32.mrf.mxu0
    %v714 = vadd.f32 0.0, %v713
    %715 = vdwg.mxu0
    %v716 = vsel %vm120, %v691, -1e+30
    %v717 = vsel %vm120, %v714, -1e+30
    %v718 = vsel %vm192, %v716, -inf
    %719 = vmax.xlane.f32.xlu0 %v718
    %v720 = vpop.xlane.xlu0 %719
    %v721 = vsel %vm192, %v717, -inf
    %722 = vmax.xlane.f32.xlu0 %v721
    %v723 = vpop.xlane.xlu0 %722
    %v724 = vmax.f32 %v720, 0.0
    %v725 = vmax.f32 %v723, 0.0
    %v726 = vsub.f32 %v716, %v724
    %v727 = vsub.f32 %v717, %v725
    %v728 = vmul.f32 %v726, 1.442695
    %v729 = vpow.pop %v728
    %v730 = vmul.f32 %v727, 1.442695
    %v731 = vpow.pop %v730
    %v732 = vsel %vm192, %v729, 0.0
    %733 = vadd.xlane.f32.xlu0 %v732
    %v734 = vpop.xlane.xlu0 %733
    %v735 = vsel %vm192, %v731, 0.0
    %736 = vadd.xlane.f32.xlu0 %v735
    %v737 = vpop.xlane.xlu0 %736
    %v738 = vsub.f32 0.0, %v724
    %v739 = vsub.f32 0.0, %v725
    %v740 = vmul.f32 %v738, 1.442695
    %v741 = vpow.pop %v740
    %v742 = vmul.f32 %v739, 1.442695
    %v743 = vpow.pop %v742
    %v744 = vadd.f32 %v734, %v741
    %v745 = vadd.f32 %v737, %v743
    %747 = vrot.lane.b32.xlu0 %v668, 64
    %v748 = vpop.permute.xlu0 %747
    %v751 = vsel %vm192, %v729, 0
    %753 = vmatpush.msra.mxu0 0.0
    %754 = vmatpush.msra.mxu0 0.0
    %755 = vmatpush.msra.mxu0 0.0
    %756 = vmatpush.msra.mxu0 0.0
    %757 = vmatpush.msra.mxu0 0.0
    %758 = vmatpush.msra.mxu0 0.0
    %759 = vmatpush.msra.mxu0 0.0
    %760 = vmatpush.msra.mxu0 0.0
    %761 = vmatpush.msra.mxu0 0.0
    %762 = vmatpush.msra.mxu0 0.0
    %763 = vmatpush.msra.mxu0 0.0
    %764 = vmatpush.msra.mxu0 0.0
    %765 = vmatpush.msra.mxu0 0.0
    %766 = vmatpush.msra.mxu0 0.0
    %767 = vmatpush.msra.mxu0 0.0
    %768 = vmatpush.msra.mxu0 %v748
    %769 = vmatmul.f32.gmra.mxu0 %v751
    %v770 = vpop.f32.mrf.mxu0
    %v771 = vadd.f32 0.0, %v770
    %772 = vdwg.mxu0
    %774 = vrot.lane.b32.xlu0 %v669, 64
    %v775 = vpop.permute.xlu0 %774
    %v778 = vsel %vm192, %v731, 0
    %780 = vmatpush.msra.mxu0 0.0
    %781 = vmatpush.msra.mxu0 0.0
    %782 = vmatpush.msra.mxu0 0.0
    %783 = vmatpush.msra.mxu0 0.0
    %784 = vmatpush.msra.mxu0 0.0
    %785 = vmatpush.msra.mxu0 0.0
    %786 = vmatpush.msra.mxu0 0.0
    %787 = vmatpush.msra.mxu0 0.0
    %788 = vmatpush.msra.mxu0 0.0
    %789 = vmatpush.msra.mxu0 0.0
    %790 = vmatpush.msra.mxu0 0.0
    %791 = vmatpush.msra.mxu0 0.0
    %792 = vmatpush.msra.mxu0 0.0
    %793 = vmatpush.msra.mxu0 0.0
    %794 = vmatpush.msra.mxu0 0.0
    %795 = vmatpush.msra.mxu0 %v775
    %796 = vmatmul.f32.gmra.mxu0 %v778
    %v797 = vpop.f32.mrf.mxu0
    %v798 = vadd.f32 0.0, %v797
    %799 = vdwg.mxu0
    %v800 = vrcp.pop %v744
    %v801 = vmul.f32 %v744, %v800
    %v802 = vsub.f32 1.0, %v801
    %v803 = vmul.f32 %v800, %v802
    %v804 = vadd.f32 %v800, %v803
    %vm805 = vweird.f32 %v744
    %vm806 = vweird.f32 %v800
    %vm807 = vmor %vm805, %vm806
    %v808 = vsel %vm807, %v800, %v804
    %v809 = vand.u32 2147483647, %v744
    %vm810 = vcmp.eq.f32.partialorder %v809, 8.507059e+37
    %v811 = vand.u32 %v744, 2147483648
    %v812 = vor.u32 1.1754944e-38, %v811
    %v813 = vsel %vm810, %v812, %v808
    %v814 = vmul.f32 %v771, %v813
    %v815 = vrcp.pop %v745
    %v816 = vmul.f32 %v745, %v815
    %v817 = vsub.f32 1.0, %v816
    %v818 = vmul.f32 %v815, %v817
    %v819 = vadd.f32 %v815, %v818
    %vm820 = vweird.f32 %v745
    %vm821 = vweird.f32 %v815
    %vm822 = vmor %vm820, %vm821
    %v823 = vsel %vm822, %v815, %v819
    %v824 = vand.u32 2147483647, %v745
    %vm825 = vcmp.eq.f32.partialorder %v824, 8.507059e+37
    %v826 = vand.u32 %v745, 2147483648
    %v827 = vor.u32 1.1754944e-38, %v826
    %v828 = vsel %vm825, %v827, %v823
    %v829 = vmul.f32 %v798, %v828
    %v830 = vadd.f32 %v655, %v814
    %v831 = vadd.f32 %v656, %v829
    %v832 = vld [vmem:[#allocation7] sm:$0xff]
    %v833 = vld [vmem:[#allocation7 + $0x8] sm:$0xff]
    %v834 = vld [vmem:[#allocation7 + $0x10] sm:$0xff]
    %v835 = vld [vmem:[#allocation7 + $0x18] sm:$0xff]
    %v836 = vld [vmem:[%s4] sm:$0x1]
    %v838 = vperm.slane %v836, 0
    %v841 = vsel %vm84, %v830, 0
    %v844 = vsel %vm84, %v831, 0
    %846 = vmatpush.msra.mxu0 0.0
    %847 = vmatpush.msra.mxu0 0.0
    %848 = vmatpush.msra.mxu0 0.0
    %849 = vmatpush.msra.mxu0 0.0
    %850 = vmatpush.msra.mxu0 0.0
    %851 = vmatpush.msra.mxu0 0.0
    %852 = vmatpush.msra.mxu0 0.0
    %853 = vmatpush.msra.mxu0 0.0
    %854 = vmatpush.msra.mxu0 0.0
    %855 = vmatpush.msra.mxu0 0.0
    %856 = vmatpush.msra.mxu0 0.0
    %857 = vmatpush.msra.mxu0 0.0
    %858 = vmatpush.msra.mxu0 %v835
    %859 = vmatpush.msra.mxu0 %v834
    %860 = vmatpush.msra.mxu0 %v833
    %861 = vmatpush.msra.mxu0 %v832
    %862 = vmatmul.f32.gmra.mxu0 %v841
    %v863 = vpop.f32.mrf.mxu0
    %v864 = vadd.f32 %v838, %v863
    %865 = vmatmul.f32.gmra.mxu0 %v844
    %v866 = vpop.f32.mrf.mxu0
    %v867 = vadd.f32 %v838, %v866
    %868 = vdwg.mxu0
    %v869 = vadd.f32 %v864, %v74
    %v870 = vadd.f32 %v867, %v75
    %v871 = vsel %vm84, %v869, 0.0
    %872 = vadd.xlane.f32.xlu0 %v871
    %v873 = vpop.xlane.xlu0 %872
    %v874 = vsel %vm84, %v870, 0.0
    %875 = vadd.xlane.f32.xlu0 %v874
    %v876 = vpop.xlane.xlu0 %875
    %v877 = vrcp.pop 32.0
    %v878 = vmul.f32 32.0, %v877
    %v879 = vsub.f32 1.0, %v878
    %v880 = vmul.f32 %v877, %v879
    %v881 = vadd.f32 %v877, %v880
    %vm882 = vweird.f32 %v877
    %v883 = vsel %vm882, %v877, %v881
    %v884 = vmul.f32 %v873, %v883
    %v885 = vmul.f32 %v876, %v883
    %v886 = vsub.f32 %v869, %v884
    %v887 = vsub.f32 %v870, %v885
    %v888 = vmul.f32 %v886, %v886
    %v889 = vmul.f32 %v887, %v887
    %v890 = vsel %vm84, %v888, 0.0
    %891 = vadd.xlane.f32.xlu0 %v890
    %v892 = vpop.xlane.xlu0 %891
    %v893 = vsel %vm84, %v889, 0.0
    %894 = vadd.xlane.f32.xlu0 %v893
    %v895 = vpop.xlane.xlu0 %894
    %v896 = vmul.f32 %v892, %v883
    %v897 = vmul.f32 %v895, %v883
    %v898 = vadd.f32 %v896, 1e-05
    %v899 = vadd.f32 %v897, 1e-05
    %v900 = vrsqrt.pop %v898
    %v901 = vmul.f32 %v900, %v898
    %v902 = vmul.f32 %v901, %v900
    %v903 = vmul.f32 0.5, %v902
    %v904 = vsub.f32 1.5, %v903
    %v905 = vmul.f32 %v900, %v904
    %vm906 = vweird.f32 %v898
    %vm907 = vweird.f32 %v900
    %vm908 = vmor %vm906, %vm907
    %v909 = vsel %vm908, %v900, %v905
    %v910 = vrsqrt.pop %v899
    %v911 = vmul.f32 %v910, %v899
    %v912 = vmul.f32 %v911, %v910
    %v913 = vmul.f32 0.5, %v912
    %v914 = vsub.f32 1.5, %v913
    %v915 = vmul.f32 %v910, %v914
    %vm916 = vweird.f32 %v899
    %vm917 = vweird.f32 %v910
    %vm918 = vmor %vm916, %vm917
    %v919 = vsel %vm918, %v910, %v915
    %v920 = vmul.f32 %v886, %v909
    %v921 = vmul.f32 %v887, %v919
    %v922 = vld [vmem:[%s5] sm:$0x1]
    %v924 = vperm.slane %v922, 0
    %v926 = vmul.f32 %v920, %v924
    %v927 = vmul.f32 %v921, %v924
    %v928 = vld [vmem:[%s6] sm:$0x1]
    %v930 = vperm.slane %v928, 0
    %v932 = vadd.f32 %v926, %v930
    %v933 = vadd.f32 %v927, %v930
    %934 = vst.msk [vmem:[#allocation8] sm:$0xff] %vm84, %v932
    %935 = vst.msk [vmem:[#allocation8 + $0x8] sm:$0xff] %vm84, %v933
    // Predicated region
    $region42: #{tpu_custom_call.1} parent=1 // pred_check
      _
    $region43: #{tpu_custom_call.1} parent=1 // pred_check_branch
      %937 = sbr.rel (0) target = $region45
    $region44: #{tpu_custom_call.1} parent=1 // pred_region
      %939 = vsyncadd [#allocation4], 0
      %s940 = sshll.u32 [#allocation8], 4
      %s941 = int_to_ptr.vmem [resolvable:$true] %s940
      %s942 = sshll.u32 %s7, 4
      %s943 = int_to_ptr.hbm [resolvable:$true] %s942
      %948 = dma.vmem_to_hbm [thread:$0]  %s941, 256, %s943, [#allocation4], 128, 128, 8
    $region45: #{tpu_custom_call.1} parent=1 // pred_fallthru
      _
    // Predicated region
    $region46: #{tpu_custom_call.1} parent=1 // pred_check
      _
    $region47: #{tpu_custom_call.1} parent=1 // pred_check_branch
      %950 = sbr.rel (0) target = $region49
    $region48: #{tpu_custom_call.1} parent=1 // pred_region
      %952 = dma.done [#allocation4], 256
    $region49: #{tpu_custom_call.1} parent=1 // pred_fallthru
      _
    %953 = vsyncpa [#allocation3], 1
    %954 = vsyncpa [#allocation6], 1
    %955 = vsyncpa [#allocation4], 1

</llo_original>
